<compile_context>
chip_gen: v5e
topology: v5e:2x2
jax: 0.10.0
libtpu: 0.0.40
codegen_flags: <defaults>
</compile_context>

<pallas_src>
import math
from functools import partial

import jax
import jax.numpy as jnp
from jax.experimental import pallas as pl
from jax.experimental.pallas import tpu as pltpu

LN_EPS = 1e-12  # espnet LayerNorm default

# bf16 MXU inputs (2-4x MXU throughput on v5e/v6e/v7x); f32 accumulation and
# f32 LayerNorm/softmax math are kept everywhere.
USE_BF16_MATMUL = True
_MM_DTYPE = jnp.bfloat16 if USE_BF16_MATMUL else jnp.float32
_QKV_DTYPE = jnp.bfloat16 if USE_BF16_MATMUL else jnp.float32


def _vmem_limit_bytes():
    # ~75% of physical per-core VMEM: v5e/v6e (128 MiB) -> 96 MiB, v7x (64 MiB)
    # -> 48 MiB.  Falls back to a value that is safe on every generation.
    try:
        cap = int(pltpu.get_tpu_info().vmem_capacity_bytes)
        return min((cap * 3) // 4, 112 * 1024 * 1024)
    except Exception:
        return 48 * 1024 * 1024


_VMEM_LIMIT = _vmem_limit_bytes()


def _cparams(semantics):
    return pltpu.CompilerParams(
        dimension_semantics=semantics, vmem_limit_bytes=_VMEM_LIMIT)


def _pick_row_tile(m, target=512):
    """Largest multiple-of-8 divisor of m that is <= target (m itself if none)."""
    if m <= target:
        return m
    best = m
    for d in range(8, target + 1, 8):
        if m % d == 0:
            best = d
    return best


def _ln(x, g, b, eps):
    mean = jnp.mean(x, axis=-1, keepdims=True)
    xc = x - mean
    var = jnp.mean(xc * xc, axis=-1, keepdims=True)
    return xc * jax.lax.rsqrt(var + eps) * g + b


def _mm(a, w):
    # bf16 (or f32) MXU inputs, f32 accumulation.
    return jnp.dot(a.astype(_MM_DTYPE), w.astype(_MM_DTYPE),
                   preferred_element_type=jnp.float32)


# ----------------------------- Pallas kernels -----------------------------

def _embed_kernel(x_ref, w_ref, b_ref, g_ref, be_ref, pe_ref, o_ref, *, eps, scale):
    # Linear -> LayerNorm -> (Dropout=id) -> ReLU -> x*sqrt(d) + positional enc
    x = x_ref[...].astype(jnp.float32)                       # (tt, idim)
    y = _mm(x, w_ref[...]) + b_ref[...]
    y = _ln(y, g_ref[...], be_ref[...], eps)
    y = jnp.maximum(y, 0.0)
    o_ref[...] = (y * scale + pe_ref[...]).astype(o_ref.dtype)


def embed(x, w, b, g, be, pe, d_model):
    B, T, idim = x.shape
    D = w.shape[1]
    tt = _pick_row_tile(T, target=256)
    return pl.pallas_call(
        partial(_embed_kernel, eps=LN_EPS, scale=math.sqrt(d_model)),
        out_shape=jax.ShapeDtypeStruct((B, T, D), jnp.float32),
        grid=(B, T // tt),
        in_specs=[
            pl.BlockSpec((None, tt, idim), lambda bi, ti: (bi, ti, 0)),
            pl.BlockSpec((idim, D), lambda bi, ti: (0, 0)),
            pl.BlockSpec((1, D), lambda bi, ti: (0, 0)),
            pl.BlockSpec((1, D), lambda bi, ti: (0, 0)),
            pl.BlockSpec((1, D), lambda bi, ti: (0, 0)),
            pl.BlockSpec((tt, D), lambda bi, ti: (ti, 0)),   # pe shared across batch
        ],
        out_specs=pl.BlockSpec((None, tt, D), lambda bi, ti: (bi, ti, 0)),
        compiler_params=_cparams(("parallel", "parallel")),
    )(x, w, b.reshape(1, D), g.reshape(1, D), be.reshape(1, D), pe)


def _ln_qkv_kernel(x_ref, g_ref, b_ref, w_ref, bias_ref, o_ref, *, eps):
    # Pre-norm LayerNorm fused with the concatenated Q|K|V projection (D -> 3D).
    # 1/sqrt(dk) is already folded into the Q slice of w/bias.
    x = x_ref[...].astype(jnp.float32)
    xn = _ln(x, g_ref[...], b_ref[...], eps)
    y = _mm(xn, w_ref[...]) + bias_ref[...]
    o_ref[...] = y.astype(o_ref.dtype)


def ln_qkv(x, g, b, wqkv, bqkv):
    M, D = x.shape
    N = wqkv.shape[1]
    tm = _pick_row_tile(M)
    return pl.pallas_call(
        partial(_ln_qkv_kernel, eps=LN_EPS),
        out_shape=jax.ShapeDtypeStruct((M, N), _QKV_DTYPE),
        grid=(M // tm,),
        in_specs=[
            pl.BlockSpec((tm, D), lambda i: (i, 0)),
            pl.BlockSpec((1, D), lambda i: (0, 0)),
            pl.BlockSpec((1, D), lambda i: (0, 0)),
            # TODO(synk): on v7x add pipeline_mode=pl.Buffered(1) to this
            # constant-index weight block (avoids double-buffering it in VMEM).
            pl.BlockSpec((D, N), lambda i: (0, 0)),
            pl.BlockSpec((1, N), lambda i: (0, 0)),
        ],
        out_specs=pl.BlockSpec((tm, N), lambda i: (i, 0)),
        compiler_params=_cparams(("parallel",)),
    )(x, g.reshape(1, D), b.reshape(1, D), wqkv, bqkv.reshape(1, N))


def _attn_oproj_kernel(q_ref, kv_ref, m_ref, res_ref, wo_ref, bo_ref, o_ref, *, heads):
    # q_ref: (H, tq, dk)  kv_ref: (2, H, T, dk)  m_ref: (1, T)  res_ref/o_ref: (tq, D)
    # Head-major layout: per-head slices are leading-axis (free) slices; the
    # (tq, D) context is built once and written with a single lane-dense store.
    mask = m_ref[...] > 0.0                                   # (1, T) key mask
    ctx = []
    for h in range(heads):
        q = q_ref[h].astype(_MM_DTYPE)                        # (tq, dk), pre-scaled
        k = kv_ref[0, h].astype(_MM_DTYPE)                    # (T, dk)
        v = kv_ref[1, h].astype(_MM_DTYPE)                    # (T, dk)
        s = jax.lax.dot_general(q, k, (((1,), (1,)), ((), ())),
                                preferred_element_type=jnp.float32)   # (tq, T)
        s = jnp.where(mask, s, -1e30)
        p = jnp.exp(s - jnp.max(s, axis=-1, keepdims=True))
        p = p * pl.reciprocal(jnp.sum(p, axis=-1, keepdims=True), approx=True)
        p = jnp.where(mask, p, 0.0)                           # espnet zeroes masked weights
        ctx.append(jnp.dot(p.astype(_MM_DTYPE), v, preferred_element_type=jnp.float32))
    ctx = jnp.concatenate(ctx, axis=-1)                       # (tq, D)
    # fused attention output projection + residual add
    y = _mm(ctx, wo_ref[...]) + bo_ref[...] + res_ref[...].astype(jnp.float32)
    o_ref[...] = y.astype(o_ref.dtype)


def attention_oproj(q, kv, mask_f, res, wo, bo, heads):
    """q: (B,H,T,dk)  kv: (B,2,H,T,dk)  mask_f: (B,1,T)  res: (B,T,D) -> (B,T,D)."""
    B, H, T, dk = q.shape
    D = H * dk
    tq = _pick_row_tile(T, target=256)   # query-tile grid axis bounds the (tq,T) scores
    # TODO(synk): for very long T also tile keys (flash-style online softmax).
    return pl.pallas_call(
        partial(_attn_oproj_kernel, heads=heads),
        out_shape=jax.ShapeDtypeStruct((B, T, D), res.dtype),
        grid=(B, T // tq),
        in_specs=[
            pl.BlockSpec((None, H, tq, dk), lambda bi, qi: (bi, 0, qi, 0)),
            pl.BlockSpec((None, 2, H, T, dk), lambda bi, qi: (bi, 0, 0, 0, 0)),
            pl.BlockSpec((None, 1, T), lambda bi, qi: (bi, 0, 0)),
            pl.BlockSpec((None, tq, D), lambda bi, qi: (bi, qi, 0)),   # residual
            pl.BlockSpec((D, D), lambda bi, qi: (0, 0)),               # wo
            pl.BlockSpec((1, D), lambda bi, qi: (0, 0)),               # bo
        ],
        out_specs=pl.BlockSpec((None, tq, D), lambda bi, qi: (bi, qi, 0)),
        compiler_params=_cparams(("parallel", "parallel")),
    )(q, kv, mask_f, res, wo, bo.reshape(1, D))


def _ffn_kernel(*refs, eps, final_ln):
    # x = x + W2 relu(W1 LN2(x) + b1) + b2 ; optionally followed by after_norm.
    if final_ln:
        (x_ref, g_ref, b_ref, w1_ref, b1_ref, w2_ref, b2_ref,
         fg_ref, fb_ref, o_ref) = refs
    else:
        (x_ref, g_ref, b_ref, w1_ref, b1_ref, w2_ref, b2_ref, o_ref) = refs
    x = x_ref[...].astype(jnp.float32)
    xn = _ln(x, g_ref[...], b_ref[...], eps)
    h = jnp.maximum(_mm(xn, w1_ref[...]) + b1_ref[...], 0.0)
    y = x + _mm(h, w2_ref[...]) + b2_ref[...]
    if final_ln:                                   # fused after_norm (last layer)
        y = _ln(y, fg_ref[...], fb_ref[...], eps)
    o_ref[...] = y.astype(o_ref.dtype)


def ffn(x, g, b, w1, b1, w2, b2, final_gb=None):
    M, D = x.shape
    F = w1.shape[1]
    tm = _pick_row_tile(M)
    final_ln = final_gb is not None
    in_specs = [
        pl.BlockSpec((tm, D), lambda i: (i, 0)),
        pl.BlockSpec((1, D), lambda i: (0, 0)),
        pl.BlockSpec((1, D), lambda i: (0, 0)),
        # TODO(synk): on v7x add pipeline_mode=pl.Buffered(1) to w1/w2 blocks
        # (constant index) so the big FFN weights are not double-buffered.
        pl.BlockSpec((D, F), lambda i: (0, 0)),
        pl.BlockSpec((1, F), lambda i: (0, 0)),
        pl.BlockSpec((F, D), lambda i: (0, 0)),
        pl.BlockSpec((1, D), lambda i: (0, 0)),
    ]
    args = [x, g.reshape(1, D), b.reshape(1, D), w1, b1.reshape(1, F),
            w2, b2.reshape(1, D)]
    if final_ln:
        fg, fb = final_gb
        in_specs += [pl.BlockSpec((1, D), lambda i: (0, 0)),
                     pl.BlockSpec((1, D), lambda i: (0, 0))]
        args += [fg.reshape(1, D), fb.reshape(1, D)]
    return pl.pallas_call(
        partial(_ffn_kernel, eps=LN_EPS, final_ln=final_ln),
        out_shape=jax.ShapeDtypeStruct((M, D), x.dtype),
        grid=(M // tm,),
        in_specs=in_specs,
        out_specs=pl.BlockSpec((tm, D), lambda i: (i, 0)),
        compiler_params=_cparams(("parallel",)),
    )(*args)


def _layernorm_kernel(x_ref, g_ref, b_ref, o_ref, *, eps):
    x = x_ref[...].astype(jnp.float32)
    o_ref[...] = _ln(x, g_ref[...], b_ref[...], eps).astype(o_ref.dtype)


def layernorm(x, g, b):
    # Only used when there are zero encoder layers (after_norm is otherwise
    # fused into the last layer's FFN kernel).
    M, D = x.shape
    tm = _pick_row_tile(M)
    return pl.pallas_call(
        partial(_layernorm_kernel, eps=LN_EPS),
        out_shape=jax.ShapeDtypeStruct((M, D), x.dtype),
        grid=(M // tm,),
        in_specs=[
            pl.BlockSpec((tm, D), lambda i: (i, 0)),
            pl.BlockSpec((1, D), lambda i: (0, 0)),
            pl.BlockSpec((1, D), lambda i: (0, 0)),
        ],
        out_specs=pl.BlockSpec((tm, D), lambda i: (i, 0)),
        compiler_params=_cparams(("parallel",)),
    )(x, g.reshape(1, D), b.reshape(1, D))


# ----------------------------- JAX glue -----------------------------------

def sinusoidal_pe(T, d):
    pos = jnp.arange(T, dtype=jnp.float32)[:, None]
    div = jnp.exp(jnp.arange(0, d, 2, dtype=jnp.float32) * (-math.log(10000.0) / d))
    pe = jnp.zeros((T, d), jnp.float32)
    pe = pe.at[:, 0::2].set(jnp.sin(pos * div))
    pe = pe.at[:, 1::2].set(jnp.cos(pos * div))
    return pe


def custom_encoder_forward(params, xs, masks):
    """xs: (B, T, idim) float32, masks: (B, 1, T) bool  ->  (xs_out, masks)."""
    B, T, idim = xs.shape
    d = params["d_model"]
    H = params["heads"]
    dk = d // H

    # Input layer ('linear'): fused Linear+LN+ReLU+posenc with a shared (T, d)
    # pe table (no batch tiling of pe).
    pe = sinusoidal_pe(T, d)
    e = params["embed"]
    x = embed(xs, e["w"], e["b"], e["g"], e["be"], pe, d)     # (B, T, d) f32
    x = x.reshape(B * T, d)

    mask_f = masks.astype(jnp.float32)                        # (B, 1, T)

    layers = params["layers"]
    n_layers = len(layers)
    for li, lyr in enumerate(layers):
        # --- pre-norm LN1 fused with the pre-concatenated QKV projection ---
        qkv = ln_qkv(x, lyr["ln1_g"], lyr["ln1_b"], lyr["wqkv"], lyr["bqkv"])  # (B*T,3d)
        # head-major layout so per-head slices inside the kernel are lane-aligned
        qkv_hm = jnp.transpose(qkv.reshape(B, T, 3, H, dk), (0, 2, 3, 1, 4))   # (B,3,H,T,dk)
        q = qkv_hm[:, 0]                      # (B,H,T,dk); 1/sqrt(dk) folded into Wq
        kv = qkv_hm[:, 1:]                    # (B,2,H,T,dk)
        # --- fused MHSA + O-projection + residual ---
        y = attention_oproj(q, kv, mask_f, x.reshape(B, T, d),
                            lyr["wo"], lyr["bo"], H)           # (B, T, d)
        # --- fused LN2 + FFN + residual (+ after_norm on the last layer) ---
        final_gb = ((params["after_norm_g"], params["after_norm_b"])
                    if li == n_layers - 1 else None)
        x = ffn(y.reshape(B * T, d), lyr["ln2_g"], lyr["ln2_b"],
                lyr["w1"], lyr["b1"], lyr["w2"], lyr["b2"], final_gb=final_gb)

    if n_layers == 0:   # normalize_before=True with no blocks
        x = layernorm(x, params["after_norm_g"], params["after_norm_b"])
    return x.reshape(B, T, d), masks


def init_params(key, idim, d_model, d_ff, heads, num_layers):
    """Raw f32 parameters matching the PyTorch module layout."""
    def w(key, shape):
        return 0.02 * jax.random.normal(key, shape, jnp.float32)

    keys = jax.random.split(key, 2 + num_layers)
    params = {"d_model": d_model, "heads": heads}
    params["embed"] = {
        "w": w(keys[0], (idim, d_model)),
        "b": jnp.zeros((d_model,), jnp.float32),
        "g": jnp.ones((d_model,), jnp.float32),
        "be": jnp.zeros((d_model,), jnp.float32),
    }
    layers = []
    for li in range(num_layers):
        lk = jax.random.split(keys[2 + li], 6)
        layers.append({
            "ln1_g": jnp.ones((d_model,), jnp.float32),
            "ln1_b": jnp.zeros((d_model,), jnp.float32),
            "wq": w(lk[0], (d_model, d_model)), "bq": jnp.zeros((d_model,), jnp.float32),
            "wk": w(lk[1], (d_model, d_model)), "bk": jnp.zeros((d_model,), jnp.float32),
            "wv": w(lk[2], (d_model, d_model)), "bv": jnp.zeros((d_model,), jnp.float32),
            "wo": w(lk[3], (d_model, d_model)), "bo": jnp.zeros((d_model,), jnp.float32),
            "ln2_g": jnp.ones((d_model,), jnp.float32),
            "ln2_b": jnp.zeros((d_model,), jnp.float32),
            "w1": w(lk[4], (d_model, d_ff)), "b1": jnp.zeros((d_ff,), jnp.float32),
            "w2": w(lk[5], (d_ff, d_model)), "b2": jnp.zeros((d_model,), jnp.float32),
        })
    params["layers"] = layers
    params["after_norm_g"] = jnp.ones((d_model,), jnp.float32)
    params["after_norm_b"] = jnp.zeros((d_model,), jnp.float32)
    return params


def prepare_params(raw):
    """One-time parameter transform, done OUTSIDE the forward pass:
    concat Wq|Wk|Wv, fold 1/sqrt(dk) into Wq/bq, cast matmul weights to the
    MXU input dtype (bf16). Biases / LN params stay f32."""
    d, H = raw["d_model"], raw["heads"]
    scale = 1.0 / math.sqrt(d // H)
    wdt = _MM_DTYPE
    p = {"d_model": d, "heads": H}
    e = raw["embed"]
    p["embed"] = {"w": e["w"].astype(wdt), "b": e["b"], "g": e["g"], "be": e["be"]}
    layers = []
    for lyr in raw["layers"]:
        wqkv = jnp.concatenate([lyr["wq"] * scale, lyr["wk"], lyr["wv"]],
                               axis=1).astype(wdt)
        bqkv = jnp.concatenate([lyr["bq"] * scale, lyr["bk"], lyr["bv"]], axis=0)
        layers.append({
            "ln1_g": lyr["ln1_g"], "ln1_b": lyr["ln1_b"],
            "wqkv": wqkv, "bqkv": bqkv,
            "wo": lyr["wo"].astype(wdt), "bo": lyr["bo"],
            "ln2_g": lyr["ln2_g"], "ln2_b": lyr["ln2_b"],
            "w1": lyr["w1"].astype(wdt), "b1": lyr["b1"],
            "w2": lyr["w2"].astype(wdt), "b2": lyr["b2"],
        })
    p["layers"] = layers
    p["after_norm_g"] = raw["after_norm_g"]
    p["after_norm_b"] = raw["after_norm_b"]
    return p


if __name__ == "__main__":
    B, T, idim = 2, 8, 16
    d_model, d_ff, heads, num_layers = 32, 64, 4, 2

    key = jax.random.PRNGKey(0)
    k_param, k_x = jax.random.split(key)
    raw_params = init_params(k_param, idim, d_model, d_ff, heads, num_layers)
    params = prepare_params(raw_params)   # concat/scale/cast ONCE, outside forward

    xs = jax.random.normal(k_x, (B, T, idim), jnp.float32)
    # masks: (B, 1, T) bool; second sequence has length 6 (last 2 frames padded)
    lengths = jnp.array([T, 6], jnp.int32)
    masks = (jnp.arange(T)[None, None, :] < lengths[:, None, None])

    # TODO(synk): dropout layers are identity here (inference mode); the
    # build_blocks config machinery is instantiated statically above.
    out, out_masks = custom_encoder_forward(params, xs, masks)
    jax.block_until_ready(out)
    jax.block_until_ready(out_masks)
    assert out.shape == (B, T, d_model) and out_masks.shape == (B, 1, T)
    print("KERNEL_OK")
</pallas_src>

<mosaic_0001>
module attributes {stable_mosaic.version = 11 : i64} {
  func.func @_embed_kernel(%arg0: i32, %arg1: i32, %arg2: memref<1x8x16xf32, #tpu.memory_space<vmem>>, %arg3: memref<16x32xbf16, #tpu.memory_space<vmem>>, %arg4: memref<1x32xf32, #tpu.memory_space<vmem>>, %arg5: memref<1x32xf32, #tpu.memory_space<vmem>>, %arg6: memref<1x32xf32, #tpu.memory_space<vmem>>, %arg7: memref<8x32xf32, #tpu.memory_space<vmem>>, %arg8: memref<1x8x32xf32, #tpu.memory_space<vmem>>) attributes {dimension_semantics = [#tpu.dimension_semantics<parallel>, #tpu.dimension_semantics<parallel>], iteration_bounds = array<i64: 2, 1>, scalar_prefetch = 0 : i64, scratch_operands = 0 : i64, tpu.core_type = #tpu.core_type<tc>, window_params = [{transform_indices = @transform_0, window_bounds = array<i64: 1, 8, 16>}, {pipeline_mode = #tpu.pipeline_mode<synchronous>, transform_indices = @transform_1, window_bounds = array<i64: 16, 32>}, {pipeline_mode = #tpu.pipeline_mode<synchronous>, transform_indices = @transform_2, window_bounds = array<i64: 1, 32>}, {pipeline_mode = #tpu.pipeline_mode<synchronous>, transform_indices = @transform_3, window_bounds = array<i64: 1, 32>}, {pipeline_mode = #tpu.pipeline_mode<synchronous>, transform_indices = @transform_4, window_bounds = array<i64: 1, 32>}, {transform_indices = @transform_5, window_bounds = array<i64: 8, 32>}, {transform_indices = @transform_6, window_bounds = array<i64: 1, 8, 32>}]} {
    %c0 = arith.constant 0 : index
    %c0_0 = arith.constant 0 : index
    %c0_1 = arith.constant 0 : index
    %0 = vector.load %arg2[%c0, %c0_0, %c0_1] : memref<1x8x16xf32, #tpu.memory_space<vmem>>, vector<1x8x16xf32>
    %1 = vector.shape_cast %0 : vector<1x8x16xf32> to vector<8x16xf32>
    %c0_2 = arith.constant 0 : index
    %c0_3 = arith.constant 0 : index
    %2 = vector.load %arg3[%c0_2, %c0_3] : memref<16x32xbf16, #tpu.memory_space<vmem>>, vector<16x32xbf16>
    %3 = arith.truncf %1 : vector<8x16xf32> to vector<8x16xbf16>
    %cst = arith.constant dense<0.000000e+00> : vector<8x32xf32>
    %4 = tpu.matmul %3, %2, %cst {dimension_numbers = #tpu.dot_dimension_numbers<[1], [0], [0], [1], [0, 0, 1, 1], [], []>} : vector<8x16xbf16>, vector<16x32xbf16>, vector<8x32xf32> -> vector<8x32xf32>
    %c0_4 = arith.constant 0 : index
    %c0_5 = arith.constant 0 : index
    %5 = vector.load %arg4[%c0_4, %c0_5] : memref<1x32xf32, #tpu.memory_space<vmem>>, vector<1x32xf32>
    %6 = vector.broadcast %5 : vector<1x32xf32> to vector<8x32xf32>
    %7 = arith.addf %4, %6 : vector<8x32xf32>
    %c0_6 = arith.constant 0 : index
    %c0_7 = arith.constant 0 : index
    %8 = vector.load %arg5[%c0_6, %c0_7] : memref<1x32xf32, #tpu.memory_space<vmem>>, vector<1x32xf32>
    %c0_8 = arith.constant 0 : index
    %c0_9 = arith.constant 0 : index
    %9 = vector.load %arg6[%c0_8, %c0_9] : memref<1x32xf32, #tpu.memory_space<vmem>>, vector<1x32xf32>
    %cst_10 = arith.constant dense<0.000000e+00> : vector<8xf32>
    %10 = vector.multi_reduction <add>, %7, %cst_10 [1] : vector<8x32xf32> to vector<8xf32>
    %11 = vector.shape_cast %10 : vector<8xf32> to vector<8x1xf32>
    %cst_11 = arith.constant 3.200000e+01 : f32
    %12 = vector.broadcast %cst_11 : f32 to vector<8x1xf32>
    %13 = arith.divf %11, %12 : vector<8x1xf32>
    %14 = vector.broadcast %13 : vector<8x1xf32> to vector<8x32xf32>
    %15 = arith.subf %7, %14 : vector<8x32xf32>
    %16 = arith.mulf %15, %15 : vector<8x32xf32>
    %cst_12 = arith.constant dense<0.000000e+00> : vector<8xf32>
    %17 = vector.multi_reduction <add>, %16, %cst_12 [1] : vector<8x32xf32> to vector<8xf32>
    %18 = vector.shape_cast %17 : vector<8xf32> to vector<8x1xf32>
    %cst_13 = arith.constant 3.200000e+01 : f32
    %19 = vector.broadcast %cst_13 : f32 to vector<8x1xf32>
    %20 = arith.divf %18, %19 : vector<8x1xf32>
    %cst_14 = arith.constant 9.99999996E-13 : f32
    %21 = vector.broadcast %cst_14 : f32 to vector<8x1xf32>
    %22 = arith.addf %20, %21 : vector<8x1xf32>
    %23 = math.rsqrt %22 : vector<8x1xf32>
    %24 = vector.broadcast %23 : vector<8x1xf32> to vector<8x32xf32>
    %25 = arith.mulf %15, %24 : vector<8x32xf32>
    %26 = vector.broadcast %8 : vector<1x32xf32> to vector<8x32xf32>
    %27 = arith.mulf %25, %26 : vector<8x32xf32>
    %28 = vector.broadcast %9 : vector<1x32xf32> to vector<8x32xf32>
    %29 = arith.addf %27, %28 : vector<8x32xf32>
    %cst_15 = arith.constant 0.000000e+00 : f32
    %30 = vector.broadcast %cst_15 : f32 to vector<8x32xf32>
    %31 = arith.maximumf %29, %30 : vector<8x32xf32>
    %cst_16 = arith.constant 5.65685415 : f32
    %32 = vector.broadcast %cst_16 : f32 to vector<8x32xf32>
    %33 = arith.mulf %31, %32 : vector<8x32xf32>
    %c0_17 = arith.constant 0 : index
    %c0_18 = arith.constant 0 : index
    %34 = vector.load %arg7[%c0_17, %c0_18] : memref<8x32xf32, #tpu.memory_space<vmem>>, vector<8x32xf32>
    %35 = arith.addf %33, %34 : vector<8x32xf32>
    %c0_19 = arith.constant 0 : index
    %c0_20 = arith.constant 0 : index
    %c0_21 = arith.constant 0 : index
    %36 = vector.load %arg8[%c0_19, %c0_20, %c0_21] : memref<1x8x32xf32, #tpu.memory_space<vmem>>, vector<1x8x32xf32>
    %37 = vector.shape_cast %36 : vector<1x8x32xf32> to vector<8x32xf32>
    %38 = vector.shape_cast %35 : vector<8x32xf32> to vector<1x8x32xf32>
    tpu.vector_store %arg8[%c0_19, %c0_20, %c0_21], %38 {strides = array<i32>} : memref<1x8x32xf32, #tpu.memory_space<vmem>>, vector<1x8x32xf32>,
    return
  }
  func.func @transform_0(%arg0: i32, %arg1: i32) -> (i32, i32, i32) {
    %c0_i32 = arith.constant 0 : i32
    %c0_i32_0 = arith.constant 0 : i32
    return %arg0, %arg1, %c0_i32 : i32, i32, i32
  }
  func.func @transform_1(%arg0: i32, %arg1: i32) -> (i32, i32) {
    %c0_i32 = arith.constant 0 : i32
    %c0_i32_0 = arith.constant 0 : i32
    %c0_i32_1 = arith.constant 0 : i32
    return %c0_i32, %c0_i32_0 : i32, i32
  }
  func.func @transform_2(%arg0: i32, %arg1: i32) -> (i32, i32) {
    %c0_i32 = arith.constant 0 : i32
    %c0_i32_0 = arith.constant 0 : i32
    %c0_i32_1 = arith.constant 0 : i32
    return %c0_i32, %c0_i32_0 : i32, i32
  }
  func.func @transform_3(%arg0: i32, %arg1: i32) -> (i32, i32) {
    %c0_i32 = arith.constant 0 : i32
    %c0_i32_0 = arith.constant 0 : i32
    %c0_i32_1 = arith.constant 0 : i32
    return %c0_i32, %c0_i32_0 : i32, i32
  }
  func.func @transform_4(%arg0: i32, %arg1: i32) -> (i32, i32) {
    %c0_i32 = arith.constant 0 : i32
    %c0_i32_0 = arith.constant 0 : i32
    %c0_i32_1 = arith.constant 0 : i32
    return %c0_i32, %c0_i32_0 : i32, i32
  }
  func.func @transform_5(%arg0: i32, %arg1: i32) -> (i32, i32) {
    %c0_i32 = arith.constant 0 : i32
    %c0_i32_0 = arith.constant 0 : i32
    return %arg1, %c0_i32 : i32, i32
  }
  func.func @transform_6(%arg0: i32, %arg1: i32) -> (i32, i32, i32) {
    %c0_i32 = arith.constant 0 : i32
    %c0_i32_0 = arith.constant 0 : i32
    return %arg0, %arg1, %c0_i32 : i32, i32, i32
  }
}

</mosaic_0001>

<llo_original>
// kernel: tpu_custom_call.1
$region0: #{tpu_custom_call.1}
  #allocation0 [shape = 'u32[]', space=smem, size = 0x4, offset = 0x4, fixed_abs, tag = 'smem constant byte address 0x4 - core index']
  #allocation1 [shape = 'u32[72,128]{1,0:T(1,128)}', space=vmem, size = 0x9000, scoped, tag = 'internal scratch']
  %s0 = inlined_call_operand.hbm [shape: f32[2,8,16], index: 0, kind: input, shape index: {}]
  %s1 = inlined_call_operand.hbm [shape: bf16[16,32], index: 1, kind: input, shape index: {}]
  %s2 = inlined_call_operand.vmem [shape: f32[1,32], index: 2, kind: input, shape index: {}]
  %s3 = inlined_call_operand.vmem [shape: f32[1,32], index: 3, kind: input, shape index: {}]
  %s4 = inlined_call_operand.vmem [shape: f32[1,32], index: 4, kind: input, shape index: {}]
  %s5 = inlined_call_operand.hbm [shape: f32[8,32], index: 5, kind: input, shape index: {}]
  %s6 = inlined_call_operand.hbm [shape: f32[2,8,32], index: 6, kind: output, shape index: {}]
  %s7 = sld [smem:[#allocation0]]
  $region69: #{tpu_custom_call.1} parent=0
    _
  %s9 = ssub.s32 1, %s7
  %s10 = scalar_select 0, %s9, %s7
  $region1: #{tpu_custom_call.1} parent=0
    #allocation2 [shape = 'u8[8192]{0}', space=vmem, size = 0x2000, scoped, tag = 'input window, operand 0']
    #allocation3 [shape = 's32[2]{0}', space=sflag, size = 0x8, scoped, tag = 'scoped memory for tpu_custom_call.1']
    #allocation4 [shape = 's32[2]{0}', space=sflag, size = 0x8, scoped, tag = 'scoped memory for tpu_custom_call.1']
    #allocation5 [shape = 'u8[4096]{0}', space=vmem, size = 0x1000, scoped, tag = 'input window, operand 1, single buffered']
    #allocation6 [shape = 's32[1]{0}', space=sflag, size = 0x4, scoped, tag = 'scoped memory for tpu_custom_call.1']
    #allocation7 [shape = 'u8[4096]{0}', space=vmem, size = 0x1000, scoped, tag = 'input window, operand 5, single buffered']
    #allocation8 [shape = 'u8[8192]{0}', space=vmem, size = 0x2000, scoped, tag = 'output window, operand 0']
    %11 = vsyncpa [#allocation3], 0
    %s12 = scalar_lea.sflag [#allocation3], 1
    %13 = vsyncpa %s12, 0
    %14 = vsyncpa [#allocation6], 0
    %15 = vsyncpa [#allocation4], 0
    %s16 = scalar_lea.sflag [#allocation4], 1
    %17 = vsyncpa %s16, 0
    loop: start=0, step=1, limit=4
    $region2: #{tpu_custom_call.1} parent=1 // loop_pre_header
      _
    $region3: #{tpu_custom_call.1} parent=1 // loop_header
      %s19 = sphi 0, %s23
      %p20 = scmp.ge.s32.totalorder %s19, 4
      %s26 = sphi 0, %s38
      %s27 = sphi 0, %s34
      %s28 = sphi 0, %s26
      %s29 = sphi 0, %s27
      %s30 = sphi 0, %s28
      %s31 = sphi 0, %s29
      %s43 = sphi 0, %s45
      %s46 = sphi 0, %s43
      %s47 = sphi 0, %s46
      %s63 = sphi 0, %s47
      %s67 = sphi 0, %s67
      %s69 = sphi 0, %s67
      %s70 = sphi 0, %s69
      %s84 = sphi 0, %s70
      %s88 = sphi 0, %s88
      %s90 = sphi 0, %s88
      %s91 = sphi 0, %s90
      %s105 = sphi 0, %s91
      %s109 = sphi 0, %s109
      %s111 = sphi 0, %s109
      %s112 = sphi 0, %s111
      %s126 = sphi 0, %s112
      %s130 = sphi 0, %s130
      %s132 = sphi 0, %s130
      %s133 = sphi 0, %s132
      %s147 = sphi 0, %s133
      %s153 = sphi 0, %s155
      %s156 = sphi 0, %s153
      %s157 = sphi 0, %s156
      %s173 = sphi 0, %s157
      %s181 = sphi 0, %s183
      %s184 = sphi 0, %s181
      %s185 = sphi 0, %s184
      %s201 = sphi 0, %s185
    $region4: #{tpu_custom_call.1} parent=1 // loop_header_branch
      %22 = sbr.rel (%p20) target = $region8
    $region5: #{tpu_custom_call.1} parent=1 // loop_body
      %s24 = ssub.s32 %s19, 1
      %s25 = ssub.s32 %s19, 2
      %s32 = sadd.s32 1, %s27
      %p33 = scmp.ge.s32.totalorder %s32, 1
      %s34 = scalar_select %p33, 0, %s32
      %s35 = sadd.s32 1, %s26
      %s36 = scalar_select %p33, %s35, %s26
      %p37 = scmp.ge.s32.totalorder %s36, 2
      %s38 = scalar_select %p37, 0, %s36
      %s39 = ssub.s32 %s26, %s38
      %s40 = ssub.s32 %s27, %s34
      %s41 = sor.u32 %s39, %s40
      %p42 = scmp.eq.s32.totalorder %s41, 0
      %s44 = sadd.s32 %s43, 1
      %s45 = scalar_select %p42, %s43, %s44
      %p48 = pneg %p42
      %p49 = scmp.eq.s32.totalorder %s19, 1
      %p50 = por %p48, %p49
      %p51 = scmp.ne.s32.totalorder %s43, %s46
      %p52 = scmp.eq.s32.totalorder %s19, 0
      %p53 = por %p51, %p52
      %p54 = scmp.ne.s32.totalorder %s43, %s46
      %p55 = scmp.eq.s32.totalorder %s24, 1
      %p56 = por %p54, %p55
      %p57 = scmp.ne.s32.totalorder %s46, %s47
      %p58 = scmp.eq.s32.totalorder %s24, 0
      %p59 = por %p57, %p58
      %p60 = scmp.ne.s32.totalorder %s46, %s47
      %p61 = scmp.eq.s32.totalorder %s25, 1
      %p62 = por %p60, %p61
      %p64 = scmp.ne.s32.totalorder %s47, %s63
      %p65 = scmp.eq.s32.totalorder %s25, 0
      %p66 = por %p64, %p65
      %s68 = sadd.s32 %s67, 1
      %p71 = scmp.eq.s32.totalorder %s19, 1
      %p72 = scmp.ne.s32.totalorder %s67, %s69
      %p73 = scmp.eq.s32.totalorder %s19, 0
      %p74 = por %p72, %p73
      %p75 = scmp.ne.s32.totalorder %s67, %s69
      %p76 = scmp.eq.s32.totalorder %s24, 1
      %p77 = por %p75, %p76
      %p78 = scmp.ne.s32.totalorder %s69, %s70
      %p79 = scmp.eq.s32.totalorder %s24, 0
      %p80 = por %p78, %p79
      %p81 = scmp.ne.s32.totalorder %s69, %s70
      %p82 = scmp.eq.s32.totalorder %s25, 1
      %p83 = por %p81, %p82
      %p85 = scmp.ne.s32.totalorder %s70, %s84
      %p86 = scmp.eq.s32.totalorder %s25, 0
      %p87 = por %p85, %p86
      %s89 = sadd.s32 %s88, 1
      %p92 = scmp.eq.s32.totalorder %s19, 1
      %p93 = scmp.ne.s32.totalorder %s88, %s90
      %p94 = scmp.eq.s32.totalorder %s19, 0
      %p95 = por %p93, %p94
      %p96 = scmp.ne.s32.totalorder %s88, %s90
      %p97 = scmp.eq.s32.totalorder %s24, 1
      %p98 = por %p96, %p97
      %p99 = scmp.ne.s32.totalorder %s90, %s91
      %p100 = scmp.eq.s32.totalorder %s24, 0
      %p101 = por %p99, %p100
      %p102 = scmp.ne.s32.totalorder %s90, %s91
      %p103 = scmp.eq.s32.totalorder %s25, 1
      %p104 = por %p102, %p103
      %p106 = scmp.ne.s32.totalorder %s91, %s105
      %p107 = scmp.eq.s32.totalorder %s25, 0
      %p108 = por %p106, %p107
      %s110 = sadd.s32 %s109, 1
      %p113 = scmp.eq.s32.totalorder %s19, 1
      %p114 = scmp.ne.s32.totalorder %s109, %s111
      %p115 = scmp.eq.s32.totalorder %s19, 0
      %p116 = por %p114, %p115
      %p117 = scmp.ne.s32.totalorder %s109, %s111
      %p118 = scmp.eq.s32.totalorder %s24, 1
      %p119 = por %p117, %p118
      %p120 = scmp.ne.s32.totalorder %s111, %s112
      %p121 = scmp.eq.s32.totalorder %s24, 0
      %p122 = por %p120, %p121
      %p123 = scmp.ne.s32.totalorder %s111, %s112
      %p124 = scmp.eq.s32.totalorder %s25, 1
      %p125 = por %p123, %p124
      %p127 = scmp.ne.s32.totalorder %s112, %s126
      %p128 = scmp.eq.s32.totalorder %s25, 0
      %p129 = por %p127, %p128
      %s131 = sadd.s32 %s130, 1
      %p134 = scmp.eq.s32.totalorder %s19, 1
      %p135 = scmp.ne.s32.totalorder %s130, %s132
      %p136 = scmp.eq.s32.totalorder %s19, 0
      %p137 = por %p135, %p136
      %p138 = scmp.ne.s32.totalorder %s130, %s132
      %p139 = scmp.eq.s32.totalorder %s24, 1
      %p140 = por %p138, %p139
      %p141 = scmp.ne.s32.totalorder %s132, %s133
      %p142 = scmp.eq.s32.totalorder %s24, 0
      %p143 = por %p141, %p142
      %p144 = scmp.ne.s32.totalorder %s132, %s133
      %p145 = scmp.eq.s32.totalorder %s25, 1
      %p146 = por %p144, %p145
      %p148 = scmp.ne.s32.totalorder %s133, %s147
      %p149 = scmp.eq.s32.totalorder %s25, 0
      %p150 = por %p148, %p149
      %s151 = ssub.s32 %s27, %s34
      %p152 = scmp.eq.s32.totalorder %s151, 0
      %s154 = sadd.s32 %s153, 1
      %s155 = scalar_select %p152, %s153, %s154
      %p158 = pneg %p152
      %p159 = scmp.eq.s32.totalorder %s19, 1
      %p160 = por %p158, %p159
      %p161 = scmp.ne.s32.totalorder %s153, %s156
      %p162 = scmp.eq.s32.totalorder %s19, 0
      %p163 = por %p161, %p162
      %p164 = scmp.ne.s32.totalorder %s153, %s156
      %p165 = scmp.eq.s32.totalorder %s24, 1
      %p166 = por %p164, %p165
      %p167 = scmp.ne.s32.totalorder %s156, %s157
      %p168 = scmp.eq.s32.totalorder %s24, 0
      %p169 = por %p167, %p168
      %p170 = scmp.ne.s32.totalorder %s156, %s157
      %p171 = scmp.eq.s32.totalorder %s25, 1
      %p172 = por %p170, %p171
      %p174 = scmp.ne.s32.totalorder %s157, %s173
      %p175 = scmp.eq.s32.totalorder %s25, 0
      %p176 = por %p174, %p175
      %s177 = ssub.s32 %s26, %s38
      %s178 = ssub.s32 %s27, %s34
      %s179 = sor.u32 %s177, %s178
      %p180 = scmp.eq.s32.totalorder %s179, 0
      %s182 = sadd.s32 %s181, 1
      %s183 = scalar_select %p180, %s181, %s182
      %p186 = pneg %p180
      %p187 = scmp.eq.s32.totalorder %s19, 1
      %p188 = por %p186, %p187
      %p189 = scmp.ne.s32.totalorder %s181, %s184
      %p190 = scmp.eq.s32.totalorder %s19, 0
      %p191 = por %p189, %p190
      %p192 = scmp.ne.s32.totalorder %s181, %s184
      %p193 = scmp.eq.s32.totalorder %s24, 1
      %p194 = por %p192, %p193
      %p195 = scmp.ne.s32.totalorder %s184, %s185
      %p196 = scmp.eq.s32.totalorder %s24, 0
      %p197 = por %p195, %p196
      %p198 = scmp.ne.s32.totalorder %s184, %s185
      %p199 = scmp.eq.s32.totalorder %s25, 1
      %p200 = por %p198, %p199
      %p202 = scmp.ne.s32.totalorder %s185, %s201
      %p203 = scmp.eq.s32.totalorder %s25, 0
      %p204 = por %p202, %p203
      %p205 = scmp.le.s32.totalorder 1, %s19
      %p206 = scmp.lt.s32.totalorder %s19, 3
      %p207 = pnand %p205, %p206
      %p208 = pneg %p207
      // Predicated region
      $region9: #{tpu_custom_call.1} parent=5 // pred_check
        _
      $region10: #{tpu_custom_call.1} parent=5 // pred_check_branch
        %210 = sbr.rel (%p207) target = $region12
      $region11: #{tpu_custom_call.1} parent=5 // pred_region
        %s211 = ssub.s32 %s19, 1
        // Predicated region
        $region13: #{tpu_custom_call.1} parent=11 // pred_check
          %p212 = pneg %p80
        $region14: #{tpu_custom_call.1} parent=11 // pred_check_branch
          %214 = sbr.rel (%p212) target = $region16
        $region15: #{tpu_custom_call.1} parent=11 // pred_region
          %216 = vsyncadd [#allocation6], 0
          %s217 = sshll.u32 %s1, 4
          %s218 = int_to_ptr.hbm [resolvable:$true] %s217
          %s219 = sshll.u32 [#allocation5], 4
          %s220 = int_to_ptr.vmem [resolvable:$true] %s219
          %225 = dma.hbm_to_vmem [thread:$0]  %s218, 128, %s220, [#allocation6], 64, 64, 4
        $region16: #{tpu_custom_call.1} parent=11 // pred_fallthru
          _
        // Predicated region
        $region17: #{tpu_custom_call.1} parent=11 // pred_check
          %p226 = pneg %p101
        $region18: #{tpu_custom_call.1} parent=11 // pred_check_branch
          %228 = sbr.rel (%p226) target = $region20
        $region19: #{tpu_custom_call.1} parent=11 // pred_region
          _
        $region20: #{tpu_custom_call.1} parent=11 // pred_fallthru
          _
        // Predicated region
        $region21: #{tpu_custom_call.1} parent=11 // pred_check
          %p229 = pneg %p122
        $region22: #{tpu_custom_call.1} parent=11 // pred_check_branch
          %231 = sbr.rel (%p229) target = $region24
        $region23: #{tpu_custom_call.1} parent=11 // pred_region
          _
        $region24: #{tpu_custom_call.1} parent=11 // pred_fallthru
          _
        // Predicated region
        $region25: #{tpu_custom_call.1} parent=11 // pred_check
          %p232 = pneg %p143
        $region26: #{tpu_custom_call.1} parent=11 // pred_check_branch
          %234 = sbr.rel (%p232) target = $region28
        $region27: #{tpu_custom_call.1} parent=11 // pred_region
          _
        $region28: #{tpu_custom_call.1} parent=11 // pred_fallthru
          _
        // Predicated region
        $region29: #{tpu_custom_call.1} parent=11 // pred_check
          %p235 = pneg %p169
        $region30: #{tpu_custom_call.1} parent=11 // pred_check_branch
          %237 = sbr.rel (%p235) target = $region32
        $region31: #{tpu_custom_call.1} parent=11 // pred_region
          %239 = vsyncadd [#allocation6], 0
          %s240 = smul.addr %s29, 8
          %s241 = scalar_lea.hbm %s5, %s240
          %s243 = sshll.u32 %s241, 4
          %s244 = int_to_ptr.hbm [resolvable:$true] %s243
          %s245 = sshll.u32 [#allocation7], 4
          %s246 = int_to_ptr.vmem [resolvable:$true] %s245
          %248 = dma.hbm_to_vmem [thread:$0]  %s244, 128, %s246, [#allocation6]
        $region32: #{tpu_custom_call.1} parent=11 // pred_fallthru
          _
      $region12: #{tpu_custom_call.1} parent=5 // pred_fallthru
        _
      %p249 = scmp.lt.s32.totalorder %s19, 2
      // Predicated region
      $region33: #{tpu_custom_call.1} parent=5 // pred_check
        %p250 = pneg %p249
      $region34: #{tpu_custom_call.1} parent=5 // pred_check_branch
        %252 = sbr.rel (%p250) target = $region36
      $region35: #{tpu_custom_call.1} parent=5 // pred_region
        // Predicated region
        $region37: #{tpu_custom_call.1} parent=35 // pred_check
          %p253 = pneg %p53
        $region38: #{tpu_custom_call.1} parent=35 // pred_check_branch
          %255 = sbr.rel (%p253) target = $region40
        $region39: #{tpu_custom_call.1} parent=35 // pred_region
          %s256 = sand.u32 %s43, 1
          %s257 = scalar_lea.sflag [#allocation3], %s256
          %s258 = sand.u32 %s43, 1
          %s259 = smul.addr %s258, 8
          %s260 = scalar_lea.vmem [#allocation2], %s259
          %262 = vsyncadd %s257, 0
          %s263 = sadd.s32 %s27, %s26
          %s264 = smul.addr %s263, 8
          %s265 = scalar_lea.hbm %s0, %s264
          %s267 = sshll.u32 %s265, 4
          %s268 = int_to_ptr.hbm [resolvable:$true] %s267
          %s269 = sshll.u32 %s260, 4
          %s270 = int_to_ptr.vmem [resolvable:$true] %s269
          %272 = dma.hbm_to_vmem [thread:$0]  %s268, 128, %s270, %s257
        $region40: #{tpu_custom_call.1} parent=35 // pred_fallthru
          _
      $region36: #{tpu_custom_call.1} parent=5 // pred_fallthru
        _
      %p273 = scmp.le.s32.totalorder 1, %s19
      %p274 = scmp.lt.s32.totalorder %s19, 3
      %p275 = pnand %p273, %p274
      %p276 = pneg %p275
      // Predicated region
      $region41: #{tpu_custom_call.1} parent=5 // pred_check
        _
      $region42: #{tpu_custom_call.1} parent=5 // pred_check_branch
        %278 = sbr.rel (%p275) target = $region44
      $region43: #{tpu_custom_call.1} parent=5 // pred_region
        %s279 = ssub.s32 %s19, 1
        %s280 = sand.u32 %s46, 1
        %s281 = scalar_lea.sflag [#allocation3], %s280
        %s282 = sand.u32 %s46, 1
        %s283 = smul.addr %s282, 8
        %s284 = scalar_lea.vmem [#allocation2], %s283
        // Predicated region
        $region45: #{tpu_custom_call.1} parent=43 // pred_check
          %p285 = pneg %p59
        $region46: #{tpu_custom_call.1} parent=43 // pred_check_branch
          %287 = sbr.rel (%p285) target = $region48
        $region47: #{tpu_custom_call.1} parent=43 // pred_region
          %289 = dma.done %s281, 128
        $region48: #{tpu_custom_call.1} parent=43 // pred_fallthru
          _
        // Predicated region
        $region49: #{tpu_custom_call.1} parent=43 // pred_check
          %p290 = pneg %p80
        $region50: #{tpu_custom_call.1} parent=43 // pred_check_branch
          %292 = sbr.rel (%p290) target = $region52
        $region51: #{tpu_custom_call.1} parent=43 // pred_region
          %294 = dma.done [#allocation6], 128
        $region52: #{tpu_custom_call.1} parent=43 // pred_fallthru
          _
        // Predicated region
        $region53: #{tpu_custom_call.1} parent=43 // pred_check
          %p295 = pneg %p169
        $region54: #{tpu_custom_call.1} parent=43 // pred_check_branch
          %297 = sbr.rel (%p295) target = $region56
        $region55: #{tpu_custom_call.1} parent=43 // pred_region
          %299 = dma.done [#allocation6], 128
        $region56: #{tpu_custom_call.1} parent=43 // pred_fallthru
          _
        %s300 = sand.u32 %s46, 1
        %s301 = scalar_lea.sflag [#allocation3], %s300
        %s302 = sand.u32 %s46, 1
        %s303 = smul.addr %s302, 8
        %s304 = scalar_lea.vmem [#allocation2], %s303
        %p305 = pneg %p59
        %p306 = pneg %p56
        %p307 = pneg %p80
        %p308 = pneg %p77
        %p309 = pneg %p101
        %p310 = pneg %p98
        %p311 = pneg %p122
        %p312 = pneg %p119
        %p313 = pneg %p143
        %p314 = pneg %p140
        %p315 = pneg %p169
        %p316 = pneg %p166
        %p317 = pneg %p197
        %p318 = pneg %p194
        %s319 = sand.u32 %s184, 1
        %s320 = scalar_lea.sflag [#allocation4], %s319
        %s321 = sand.u32 %s184, 1
        %s322 = smul.addr %s321, 8
        %s323 = scalar_lea.vmem [#allocation8], %s322
        %v325 = vld [vmem:[%s284] sm:$0xff]
        %v326 = vld [vmem:[#allocation5] sm:$0xf]
        %v327 = vld [vmem:[#allocation5 + $0x4] sm:$0xf]
        %v328 = vpack.c.bf16 %v325, %v325
        %v329 = vld [vmem:[%s2] sm:$0x1]
        %v331 = vperm.slane %v329, 0
        %v335 = vunpack.c.l.b16 %v326
        %v336 = vunpack.c.l.b16 %v327
        %v337 = vpack.c.b16 %v336, %v335
        %vm339 = vcmask 130048
        %v341 = vsel %vm339, %v328, 0
        %343 = vmatpush.bf16.msra.mxu0 0
        %344 = vmatpush.bf16.msra.mxu0 0
        %345 = vmatpush.bf16.msra.mxu0 0
        %346 = vmatpush.bf16.msra.mxu0 0
        %347 = vmatpush.bf16.msra.mxu0 0
        %348 = vmatpush.bf16.msra.mxu0 0
        %349 = vmatpush.bf16.msra.mxu0 0
        %350 = vmatpush.bf16.msra.mxu0 %v337
        %351 = vmatmul.bf16.gmra.mxu0 %v341
        %v352 = vpop.f32.mrf.mxu0
        %v353 = vadd.f32 %v331, %v352
        %v354 = vpop.f32.mrf.mxu0
        %355 = vdwg.mxu0
        %v356 = vld [vmem:[%s3] sm:$0x1]
        %v357 = vld [vmem:[%s4] sm:$0x1]
        %vm358 = vcmask 261120
        %v359 = vsel %vm358, %v353, 0.0
        %360 = vadd.xlane.f32.xlu0 %v359
        %v361 = vpop.xlane.xlu0 %360
        %v362 = vrcp.pop 32.0
        %v363 = vmul.f32 32.0, %v362
        %v364 = vsub.f32 1.0, %v363
        %v365 = vmul.f32 %v362, %v364
        %v366 = vadd.f32 %v362, %v365
        %vm367 = vweird.f32 %v362
        %v368 = vsel %vm367, %v362, %v366
        %v369 = vmul.f32 %v361, %v368
        %v370 = vsub.f32 %v353, %v369
        %v371 = vmul.f32 %v370, %v370
        %v372 = vsel %vm358, %v371, 0.0
        %373 = vadd.xlane.f32.xlu0 %v372
        %v374 = vpop.xlane.xlu0 %373
        %v375 = vmul.f32 %v374, %v368
        %v376 = vadd.f32 %v375, 1e-12
        %v377 = vrsqrt.pop %v376
        %v378 = vmul.f32 %v377, %v376
        %v379 = vmul.f32 %v378, %v377
        %v380 = vmul.f32 0.5, %v379
        %v381 = vsub.f32 1.5, %v380
        %v382 = vmul.f32 %v377, %v381
        %vm383 = vweird.f32 %v376
        %vm384 = vweird.f32 %v377
        %vm385 = vmor %vm383, %vm384
        %v386 = vsel %vm385, %v377, %v382
        %v387 = vmul.f32 %v370, %v386
        %v389 = vperm.slane %v356, 0
        %v391 = vmul.f32 %v387, %v389
        %v393 = vperm.slane %v357, 0
        %v395 = vadd.f32 %v391, %v393
        %v396 = vmax.f32 %v395, 0.0
        %v397 = vmul.f32 %v396, 5.656854
        %v398 = vld [vmem:[#allocation7] sm:$0xff]
        %v399 = vadd.f32 %v397, %v398
        %400 = vst.msk [vmem:[%s323] sm:$0xff] %vm358, %v399
        %s401 = sand.u32 %s184, 1
        %s402 = scalar_lea.sflag [#allocation4], %s401
        %s403 = sand.u32 %s184, 1
        %s404 = smul.addr %s403, 8
        %s405 = scalar_lea.vmem [#allocation8], %s404
        // Predicated region
        $region57: #{tpu_custom_call.1} parent=43 // pred_check
          %p406 = pneg %p194
        $region58: #{tpu_custom_call.1} parent=43 // pred_check_branch
          %408 = sbr.rel (%p406) target = $region60
        $region59: #{tpu_custom_call.1} parent=43 // pred_region
          %410 = vsyncadd %s402, 0
          %s411 = sadd.s32 %s29, %s28
          %s412 = smul.addr %s411, 8
          %s413 = scalar_lea.hbm %s6, %s412
          %s415 = sshll.u32 %s405, 4
          %s416 = int_to_ptr.vmem [resolvable:$true] %s415
          %s417 = sshll.u32 %s413, 4
          %s418 = int_to_ptr.hbm [resolvable:$true] %s417
          %420 = dma.vmem_to_hbm [thread:$0]  %s416, 128, %s418, %s402
        $region60: #{tpu_custom_call.1} parent=43 // pred_fallthru
          _
      $region44: #{tpu_custom_call.1} parent=5 // pred_fallthru
        _
      %p421 = scmp.le.s32.totalorder 2, %s19
      // Predicated region
      $region61: #{tpu_custom_call.1} parent=5 // pred_check
        %p422 = pneg %p421
      $region62: #{tpu_custom_call.1} parent=5 // pred_check_branch
        %424 = sbr.rel (%p422) target = $region64
      $region63: #{tpu_custom_call.1} parent=5 // pred_region
        %s425 = ssub.s32 %s19, 2
        // Predicated region
        $region65: #{tpu_custom_call.1} parent=63 // pred_check
          %p426 = pneg %p200
        $region66: #{tpu_custom_call.1} parent=63 // pred_check_branch
          %428 = sbr.rel (%p426) target = $region68
        $region67: #{tpu_custom_call.1} parent=63 // pred_region
          %s429 = sand.u32 %s185, 1
          %s430 = scalar_lea.sflag [#allocation4], %s429
          %s431 = sand.u32 %s185, 1
          %s432 = smul.addr %s431, 8
          %s433 = scalar_lea.vmem [#allocation8], %s432
          %435 = dma.done %s430, 128
        $region68: #{tpu_custom_call.1} parent=63 // pred_fallthru
          _
      $region64: #{tpu_custom_call.1} parent=5 // pred_fallthru
        _
    $region6: #{tpu_custom_call.1} parent=1 // loop_footer
      %s23 = sadd.s32 1, %s19
    $region7: #{tpu_custom_call.1} parent=1 // loop_footer_branch
      %18 = sbr.rel target = $region3
    $region8: #{tpu_custom_call.1} parent=1 // loop_exit
      _
    %436 = vsyncpa [#allocation3], 1
    %s437 = scalar_lea.sflag [#allocation3], 1
    %438 = vsyncpa %s437, 1
    %439 = vsyncpa [#allocation6], 1
    %440 = vsyncpa [#allocation4], 1
    %s441 = scalar_lea.sflag [#allocation4], 1
    %442 = vsyncpa %s441, 1

</llo_original>
